<compile_context>
chip_gen: v7x
topology: tpu7x:2x2x1
jax: 0.10.0
libtpu: 0.0.40
codegen_flags: <defaults>
</compile_context>

<pallas_src>
import numpy as np
import jax
import jax.numpy as jnp
from jax import lax
from jax.experimental import pallas as pl
from jax.experimental.pallas import tpu as pltpu


# ----------------------------------------------------------------------------
# Scheduler glue (EulerDiscreteScheduler, scaled_linear betas, linspace spacing)
# ----------------------------------------------------------------------------
def euler_discrete_sigmas(num_inference_steps, num_train_timesteps=1000,
                          beta_start=0.00085, beta_end=0.012):
    betas = np.linspace(beta_start ** 0.5, beta_end ** 0.5,
                        num_train_timesteps, dtype=np.float64) ** 2
    alphas_cumprod = np.cumprod(1.0 - betas)
    sigmas_all = np.sqrt((1.0 - alphas_cumprod) / alphas_cumprod)
    timesteps = np.linspace(num_train_timesteps - 1, 0, num_inference_steps,
                            dtype=np.float64)
    sigmas = np.interp(timesteps, np.arange(num_train_timesteps), sigmas_all)
    sigmas = np.concatenate([sigmas, [0.0]]).astype(np.float32)
    init_noise_sigma = float(np.sqrt(sigmas.max() ** 2 + 1.0))
    return timesteps, sigmas, init_noise_sigma


# ----------------------------------------------------------------------------
# Fully fused denoise-loop + decode kernel (single invocation, no grid).
#   latents: (B*C, HW) loop carry in vregs
#   per step i (unrolled fori_loop):
#       lat = W'_i @ lat + cond_dt_i          (W'_i = I + scale_i*dt_i*kron(I_B,w_unet))
#   epilogue:
#       img = clip(Wv' @ lat + bv', 0, 1)     (folded 1/scaling, /2+0.5, clamp)
# ----------------------------------------------------------------------------
def build_fused_pipeline(BC, HW, B3p, steps):
    def kernel(lat0_ref, w_ref, cond_ref, wv_ref, bv_ref, img_ref):
        def step(i, lat):
            # TODO(synk): real UNet2DConditionModel replaced with a synthetic 1x1
            # conv over latent channels (block-diag per batch) + additive
            # text/time conditioning; Euler scale/dt pre-folded into w_ref/cond_ref.
            w_i = w_ref[i]                     # (BC, BC)
            c_i = cond_ref[i]                  # (BC, 1) -> lane-broadcast over HW
            return jnp.dot(w_i, lat, preferred_element_type=jnp.float32) + c_i

        lat = lax.fori_loop(0, steps, step, lat0_ref[...], unroll=True)

        # TODO(synk): real AutoencoderKL decoder replaced with a synthetic 1x1
        # conv latent->RGB; no spatial upsampling (image stays at latent res).
        img = jnp.dot(wv_ref[...], lat, preferred_element_type=jnp.float32)
        img = img + bv_ref[...]
        img_ref[...] = jnp.clip(img, 0.0, 1.0)

    # No grid: everything is resident in VMEM for the whole trajectory; one
    # kernel invocation does all timesteps plus the decode.
    return pl.pallas_call(
        kernel,
        out_shape=jax.ShapeDtypeStruct((B3p, HW), jnp.float32),
    )


# ----------------------------------------------------------------------------
# Full forward pass
# ----------------------------------------------------------------------------
def emu_visual_generation_forward(prompt_embeds, params, *,
                                  height=128, width=128,
                                  num_inference_steps=4,
                                  guidance_scale=3.0,
                                  crop_info=(0, 0),
                                  original_size=(128, 128),
                                  key=None):
    """prompt_embeds: (2*B, S, HID) — cond half then uncond half (CFG), or (B, S, HID)."""
    do_cfg = guidance_scale > 1.0
    n_pe = prompt_embeds.shape[0]
    B = n_pe // 2 if do_cfg else n_pe

    vae_scale_factor = 8              # 2 ** (len(block_out_channels) - 1), 4 blocks
    C = 4                             # unet.config.in_channels
    lat_h = height // vae_scale_factor
    lat_w = width // vae_scale_factor
    HW = lat_h * lat_w
    steps = num_inference_steps
    BC = B * C
    B3 = B * 3
    B3p = ((B3 + 7) // 8) * 8         # pad VAE head to full 8-sublane tile
    scaling_factor = 0.13025

    # --- host-side scheduler setup (static) --------------------------------
    timesteps, sigmas, init_noise_sigma = euler_discrete_sigmas(steps)
    scale_tab = (1.0 / np.sqrt(sigmas[:-1] ** 2 + 1.0)).astype(np.float32)   # (steps,)
    dt_tab = (sigmas[1:] - sigmas[:-1]).astype(np.float32)                   # (steps,)
    a_tab = (scale_tab * dt_tab).astype(np.float32)                          # folded Euler scalar
    # synthetic sinusoidal time embedding table (stands in for SDXL time conditioning)
    freqs = np.arange(1, C + 1, dtype=np.float32) / 1000.0
    temb_tab = np.sin(np.outer(timesteps.astype(np.float32), freqs)).astype(np.float32)

    # TODO(synk): SDXL time_ids / added-conditions path not reproduced by the
    # synthetic UNet (original_size/crop_info/height/width unused numerically).
    del crop_info, original_size

    fused = build_fused_pipeline(BC, HW, B3p, steps)

    def _impl(prompt_embeds, w_unet, v_unet, w_vae, b_vae, noise):
        f32 = jnp.float32
        # text_embeds = mean(prompt_embeds, dim=1)  (hoisted, step-invariant)
        text_embeds = jnp.mean(prompt_embeds.astype(f32), axis=1)        # (2B or B, HID)
        bias = text_embeds @ v_unet.astype(f32)                          # (2B or B, C)
        if do_cfg:
            cond_b, uncond_b = bias[:B], bias[B:]                        # [cond; uncond]
            guided = uncond_b + guidance_scale * (cond_b - uncond_b)     # (B, C)
        else:
            guided = bias                                                # (B, C)
        guided_bc = guided.reshape(BC)                                   # b-major, c-minor
        temb_bc = jnp.tile(jnp.asarray(temb_tab), (1, B))                # (steps, B*C)
        cond_bc = guided_bc[None, :] + temb_bc                           # (steps, B*C)
        cond_dt = cond_bc * jnp.asarray(dt_tab)[:, None]                 # fold Euler dt
        cond_table = cond_dt[:, :, None].astype(f32)                     # (steps, BC, 1)

        # per-step folded denoise weights: W'_i = I + a_i * kron(I_B, w_unet)
        eye_b = jnp.eye(B, dtype=f32)
        w_block = jnp.kron(eye_b, w_unet.astype(f32))                    # (BC, BC)
        a = jnp.asarray(a_tab)[:, None, None]
        w_table = jnp.eye(BC, dtype=f32)[None] + a * w_block[None]       # (steps, BC, BC)

        # folded VAE decode: img = clip((0.5/scaling)*Wv @ lat + (0.5*b + 0.5), 0, 1)
        wv_block = jnp.kron(eye_b, w_vae.astype(f32))                    # (B3, BC)
        wv_fold = (0.5 / scaling_factor) * wv_block
        bv_fold = 0.5 * jnp.tile(b_vae.astype(f32), B) + 0.5             # (B3,)
        wv_pad = jnp.zeros((B3p, BC), f32).at[:B3].set(wv_fold)          # pad to 8 rows
        bv_pad = jnp.zeros((B3p, 1), f32).at[:B3, 0].set(bv_fold)

        lat0 = (noise.astype(f32) * init_noise_sigma).reshape(BC, HW)

        img = fused(lat0, w_table, cond_table, wv_pad, bv_pad)           # (B3p, HW) in [0,1]

        # decode_latents post-process: drop pad rows, NCHW -> NHWC, uint8.
        # TODO(synk): synthetic VAE has no upsampling; image is at latent resolution.
        img = img[:B3].reshape(B, 3, lat_h, lat_w)
        img = jnp.transpose(img, (0, 2, 3, 1))                           # NHWC, [0,1]
        return jnp.round(img * 255.0).astype(jnp.uint8)

    impl = jax.jit(_impl)
    noise = jax.random.normal(key, (B, C, lat_h, lat_w), dtype=jnp.float32)
    img_u8 = impl(prompt_embeds, params["w_unet"], params["v_unet"],
                  params["w_vae"], params["b_vae"], noise)
    # safety_checker is None -> has_nsfw_concept is None -> return (image, image)
    return img_u8[0], img_u8[0]


# ----------------------------------------------------------------------------
# main
# ----------------------------------------------------------------------------
if __name__ == "__main__":
    key = jax.random.PRNGKey(0)
    k_pe, k_w, k_v, k_wv, k_lat = jax.random.split(key, 5)

    B = 2          # batch size
    S = 8          # prompt sequence length
    HID = 32       # text embedding width
    C = 4          # latent channels

    # synthetic encoder output: cond half then uncond half (classifier-free guidance)
    # TODO(synk): EmuModel (33B multimodal LLM) encoder replaced with synthetic embeds.
    prompt_embeds = jax.random.normal(k_pe, (2 * B, S, HID), dtype=jnp.float32)

    params = {
        "w_unet": 0.2 * jax.random.normal(k_w, (C, C), dtype=jnp.float32),
        "v_unet": 0.05 * jax.random.normal(k_v, (HID, C), dtype=jnp.float32),
        "w_vae": 0.5 * jax.random.normal(k_wv, (3, C), dtype=jnp.float32),
        "b_vae": jnp.zeros((3,), dtype=jnp.float32),
    }

    img, _ = emu_visual_generation_forward(
        prompt_embeds, params,
        height=128, width=128,
        num_inference_steps=4,
        guidance_scale=3.0,
        crop_info=(0, 0),
        original_size=(128, 128),
        key=k_lat,
    )
    img = jax.block_until_ready(img)
    assert img.shape == (16, 16, 3) and img.dtype == jnp.uint8
    print("KERNEL_OK")
</pallas_src>

<mosaic_0001>
module attributes {stable_mosaic.version = 11 : i64} {
  func.func @kernel(%arg0: memref<8x256xf32, #tpu.memory_space<vmem>>, %arg1: memref<4x8x8xf32, #tpu.memory_space<vmem>>, %arg2: memref<4x8x1xf32, #tpu.memory_space<vmem>>, %arg3: memref<8x8xf32, #tpu.memory_space<vmem>>, %arg4: memref<8x1xf32, #tpu.memory_space<vmem>>, %arg5: memref<8x256xf32, #tpu.memory_space<vmem>>) attributes {dimension_semantics = [], scalar_prefetch = 0 : i64, scratch_operands = 0 : i64, tpu.core_type = #tpu.core_type<tc>} {
    %c0 = arith.constant 0 : index
    %c0_0 = arith.constant 0 : index
    %0 = vector.load %arg0[%c0, %c0_0] : memref<8x256xf32, #tpu.memory_space<vmem>>, vector<8x256xf32>
    %c0_i32 = arith.constant 0 : i32
    %1 = arith.index_cast %c0_i32 : i32 to index
    %c0_1 = arith.constant 0 : index
    %c0_2 = arith.constant 0 : index
    %2 = vector.load %arg1[%1, %c0_1, %c0_2] : memref<4x8x8xf32, #tpu.memory_space<vmem>>, vector<1x8x8xf32>
    %3 = vector.shape_cast %2 : vector<1x8x8xf32> to vector<8x8xf32>
    %4 = arith.index_cast %c0_i32 : i32 to index
    %c0_3 = arith.constant 0 : index
    %c0_4 = arith.constant 0 : index
    %5 = vector.load %arg2[%4, %c0_3, %c0_4] : memref<4x8x1xf32, #tpu.memory_space<vmem>>, vector<1x8x1xf32>
    %6 = vector.shape_cast %5 : vector<1x8x1xf32> to vector<8x1xf32>
    %cst = arith.constant dense<0.000000e+00> : vector<8x256xf32>
    %7 = tpu.matmul %3, %0, %cst {dimension_numbers = #tpu.dot_dimension_numbers<[1], [0], [0], [1], [0, 0, 1, 1], [], []>} : vector<8x8xf32>, vector<8x256xf32>, vector<8x256xf32> -> vector<8x256xf32>
    %8 = vector.broadcast %6 : vector<8x1xf32> to vector<8x256xf32>
    %9 = arith.addf %7, %8 : vector<8x256xf32>
    %c1_i32 = arith.constant 1 : i32
    %10 = arith.index_cast %c1_i32 : i32 to index
    %c0_5 = arith.constant 0 : index
    %c0_6 = arith.constant 0 : index
    %11 = vector.load %arg1[%10, %c0_5, %c0_6] : memref<4x8x8xf32, #tpu.memory_space<vmem>>, vector<1x8x8xf32>
    %12 = vector.shape_cast %11 : vector<1x8x8xf32> to vector<8x8xf32>
    %13 = arith.index_cast %c1_i32 : i32 to index
    %c0_7 = arith.constant 0 : index
    %c0_8 = arith.constant 0 : index
    %14 = vector.load %arg2[%13, %c0_7, %c0_8] : memref<4x8x1xf32, #tpu.memory_space<vmem>>, vector<1x8x1xf32>
    %15 = vector.shape_cast %14 : vector<1x8x1xf32> to vector<8x1xf32>
    %cst_9 = arith.constant dense<0.000000e+00> : vector<8x256xf32>
    %16 = tpu.matmul %12, %9, %cst_9 {dimension_numbers = #tpu.dot_dimension_numbers<[1], [0], [0], [1], [0, 0, 1, 1], [], []>} : vector<8x8xf32>, vector<8x256xf32>, vector<8x256xf32> -> vector<8x256xf32>
    %17 = vector.broadcast %15 : vector<8x1xf32> to vector<8x256xf32>
    %18 = arith.addf %16, %17 : vector<8x256xf32>
    %c2_i32 = arith.constant 2 : i32
    %19 = arith.index_cast %c2_i32 : i32 to index
    %c0_10 = arith.constant 0 : index
    %c0_11 = arith.constant 0 : index
    %20 = vector.load %arg1[%19, %c0_10, %c0_11] : memref<4x8x8xf32, #tpu.memory_space<vmem>>, vector<1x8x8xf32>
    %21 = vector.shape_cast %20 : vector<1x8x8xf32> to vector<8x8xf32>
    %22 = arith.index_cast %c2_i32 : i32 to index
    %c0_12 = arith.constant 0 : index
    %c0_13 = arith.constant 0 : index
    %23 = vector.load %arg2[%22, %c0_12, %c0_13] : memref<4x8x1xf32, #tpu.memory_space<vmem>>, vector<1x8x1xf32>
    %24 = vector.shape_cast %23 : vector<1x8x1xf32> to vector<8x1xf32>
    %cst_14 = arith.constant dense<0.000000e+00> : vector<8x256xf32>
    %25 = tpu.matmul %21, %18, %cst_14 {dimension_numbers = #tpu.dot_dimension_numbers<[1], [0], [0], [1], [0, 0, 1, 1], [], []>} : vector<8x8xf32>, vector<8x256xf32>, vector<8x256xf32> -> vector<8x256xf32>
    %26 = vector.broadcast %24 : vector<8x1xf32> to vector<8x256xf32>
    %27 = arith.addf %25, %26 : vector<8x256xf32>
    %c3_i32 = arith.constant 3 : i32
    %28 = arith.index_cast %c3_i32 : i32 to index
    %c0_15 = arith.constant 0 : index
    %c0_16 = arith.constant 0 : index
    %29 = vector.load %arg1[%28, %c0_15, %c0_16] : memref<4x8x8xf32, #tpu.memory_space<vmem>>, vector<1x8x8xf32>
    %30 = vector.shape_cast %29 : vector<1x8x8xf32> to vector<8x8xf32>
    %31 = arith.index_cast %c3_i32 : i32 to index
    %c0_17 = arith.constant 0 : index
    %c0_18 = arith.constant 0 : index
    %32 = vector.load %arg2[%31, %c0_17, %c0_18] : memref<4x8x1xf32, #tpu.memory_space<vmem>>, vector<1x8x1xf32>
    %33 = vector.shape_cast %32 : vector<1x8x1xf32> to vector<8x1xf32>
    %cst_19 = arith.constant dense<0.000000e+00> : vector<8x256xf32>
    %34 = tpu.matmul %30, %27, %cst_19 {dimension_numbers = #tpu.dot_dimension_numbers<[1], [0], [0], [1], [0, 0, 1, 1], [], []>} : vector<8x8xf32>, vector<8x256xf32>, vector<8x256xf32> -> vector<8x256xf32>
    %35 = vector.broadcast %33 : vector<8x1xf32> to vector<8x256xf32>
    %36 = arith.addf %34, %35 : vector<8x256xf32>
    %c4_i32 = arith.constant 4 : i32
    %c0_20 = arith.constant 0 : index
    %c0_21 = arith.constant 0 : index
    %37 = vector.load %arg3[%c0_20, %c0_21] : memref<8x8xf32, #tpu.memory_space<vmem>>, vector<8x8xf32>
    %cst_22 = arith.constant dense<0.000000e+00> : vector<8x256xf32>
    %38 = tpu.matmul %37, %36, %cst_22 {dimension_numbers = #tpu.dot_dimension_numbers<[1], [0], [0], [1], [0, 0, 1, 1], [], []>} : vector<8x8xf32>, vector<8x256xf32>, vector<8x256xf32> -> vector<8x256xf32>
    %c0_23 = arith.constant 0 : index
    %c0_24 = arith.constant 0 : index
    %39 = vector.load %arg4[%c0_23, %c0_24] : memref<8x1xf32, #tpu.memory_space<vmem>>, vector<8x1xf32>
    %40 = vector.broadcast %39 : vector<8x1xf32> to vector<8x256xf32>
    %41 = arith.addf %38, %40 : vector<8x256xf32>
    %cst_25 = arith.constant 0.000000e+00 : f32
    %cst_26 = arith.constant 1.000000e+00 : f32
    %42 = vector.broadcast %cst_25 : f32 to vector<8x256xf32>
    %43 = arith.maximumf %42, %41 : vector<8x256xf32>
    %44 = vector.broadcast %cst_26 : f32 to vector<8x256xf32>
    %45 = arith.minimumf %44, %43 : vector<8x256xf32>
    %c0_27 = arith.constant 0 : index
    %c0_28 = arith.constant 0 : index
    %46 = vector.load %arg5[%c0_27, %c0_28] : memref<8x256xf32, #tpu.memory_space<vmem>>, vector<8x256xf32>
    tpu.vector_store %arg5[%c0_27, %c0_28], %45 {strides = array<i32>} : memref<8x256xf32, #tpu.memory_space<vmem>>, vector<8x256xf32>,
    return
  }
}

</mosaic_0001>

<llo_original>
// kernel: _impl.1
$region0: #{_impl.1}
  #allocation0 [shape = 'u32[]', space=smem, size = 0x4, offset = 0x4, fixed_abs, tag = 'smem constant byte address 0x4 - core index']
  #allocation1 [shape = 'u32[144,128]{1,0:T(1,128)}', space=vmem, size = 0x12000, scoped, tag = 'internal scratch']
  %s0 = inlined_call_operand.vmem [shape: f32[8,256], index: 0, kind: input, shape index: {}]
  %s1 = inlined_call_operand.vmem [shape: f32[4,8,8], index: 1, kind: input, shape index: {}]
  %s2 = inlined_call_operand.vmem [shape: f32[4,8,1], index: 2, kind: input, shape index: {}]
  %s3 = inlined_call_operand.vmem [shape: f32[8,8], index: 3, kind: input, shape index: {}]
  %s4 = inlined_call_operand.vmem [shape: f32[8,1], index: 4, kind: input, shape index: {}]
  %s5 = inlined_call_operand.vmem [shape: f32[8,256], index: 5, kind: output, shape index: {}]
  %s6 = sld [smem:[#allocation0]]
  $region30: #{_impl.1} parent=0
    _
  %s8 = ssub.s32 1, %s6
  %s9 = scalar_select 0, %s8, %s6
  // Predicated region
  $region2: #{_impl.1} parent=0 // pred_check
    _
  $region3: #{_impl.1} parent=0 // pred_check_branch
    %11 = sbr.rel (0) target = $region5
  $region4: #{_impl.1} parent=0 // pred_region
    _
  $region5: #{_impl.1} parent=0 // pred_fallthru
    _
  // Predicated region
  $region6: #{_impl.1} parent=0 // pred_check
    _
  $region7: #{_impl.1} parent=0 // pred_check_branch
    %13 = sbr.rel (0) target = $region9
  $region8: #{_impl.1} parent=0 // pred_region
    _
  $region9: #{_impl.1} parent=0 // pred_fallthru
    _
  // Predicated region
  $region10: #{_impl.1} parent=0 // pred_check
    _
  $region11: #{_impl.1} parent=0 // pred_check_branch
    %15 = sbr.rel (0) target = $region13
  $region12: #{_impl.1} parent=0 // pred_region
    _
  $region13: #{_impl.1} parent=0 // pred_fallthru
    _
  // Predicated region
  $region14: #{_impl.1} parent=0 // pred_check
    _
  $region15: #{_impl.1} parent=0 // pred_check_branch
    %17 = sbr.rel (0) target = $region17
  $region16: #{_impl.1} parent=0 // pred_region
    _
  $region17: #{_impl.1} parent=0 // pred_fallthru
    _
  // Predicated region
  $region18: #{_impl.1} parent=0 // pred_check
    _
  $region19: #{_impl.1} parent=0 // pred_check_branch
    %19 = sbr.rel (0) target = $region21
  $region20: #{_impl.1} parent=0 // pred_region
    _
  $region21: #{_impl.1} parent=0 // pred_fallthru
    _
  %v20 = vld [vmem:[%s0] sm:$0xff]
  %v21 = vld [vmem:[%s0 + $0x8] sm:$0xff]
  %v22 = vld [vmem:[%s1] sm:$0xff]
  %v23 = vld [vmem:[%s2] sm:$0xff]
  %25 = vset.pattern.permute.xlu0 0
  %26 = vperm.xlu0 %25, %v23
  %v27 = vpop.permute.xlu0 %26
  %vm29 = vcmask 64512
  %v31 = vsel %vm29, %v22, 0
  %33 = vmatprep.subr.mxu0 %v21
  %34 = vmatpush1.msra.mxu0 %v20
  %35 = vmatprep.subr.mxu0 0.0
  %36 = vmatpush1.msra.mxu0 0.0
  %37 = vmatprep.subr.mxu0 0.0
  %38 = vmatpush1.msra.mxu0 0.0
  %39 = vmatprep.subr.mxu0 0.0
  %40 = vmatpush1.msra.mxu0 0.0
  %41 = vmatprep.subr.mxu0 0.0
  %42 = vmatpush1.msra.mxu0 0.0
  %43 = vmatprep.subr.mxu0 0.0
  %44 = vmatpush1.msra.mxu0 0.0
  %45 = vmatprep.subr.mxu0 0.0
  %46 = vmatpush1.msra.mxu0 0.0
  %47 = vmatprep.subr.mxu0 0.0
  %48 = vmatpush1.msra.mxu0 0.0
  %49 = vmatprep.subr.mxu0 0.0
  %50 = vmatpush1.msra.mxu0 0.0
  %51 = vmatprep.subr.mxu0 0.0
  %52 = vmatpush1.msra.mxu0 0.0
  %53 = vmatprep.subr.mxu0 0.0
  %54 = vmatpush1.msra.mxu0 0.0
  %55 = vmatprep.subr.mxu0 0.0
  %56 = vmatpush1.msra.mxu0 0.0
  %57 = vmatprep.subr.mxu0 0.0
  %58 = vmatpush1.msra.mxu0 0.0
  %59 = vmatprep.subr.mxu0 0.0
  %60 = vmatpush1.msra.mxu0 0.0
  %61 = vmatprep.subr.mxu0 0.0
  %62 = vmatpush1.msra.mxu0 0.0
  %63 = vmatprep.subr.mxu0 0.0
  %64 = vmatpush1.msra.mxu0 0.0
  %65 = vmatprep.subr.mxu0 0.0
  %66 = vmatpush1.msra.mxu0 0.0
  %67 = vmatprep.subr.mxu0 0.0
  %68 = vmatpush1.msra.mxu0 0.0
  %69 = vmatprep.subr.mxu0 0.0
  %70 = vmatpush1.msra.mxu0 0.0
  %71 = vmatprep.subr.mxu0 0.0
  %72 = vmatpush1.msra.mxu0 0.0
  %73 = vmatprep.subr.mxu0 0.0
  %74 = vmatpush1.msra.mxu0 0.0
  %75 = vmatprep.subr.mxu0 0.0
  %76 = vmatpush1.msra.mxu0 0.0
  %77 = vmatprep.subr.mxu0 0.0
  %78 = vmatpush1.msra.mxu0 0.0
  %79 = vmatprep.subr.mxu0 0.0
  %80 = vmatpush1.msra.mxu0 0.0
  %81 = vmatprep.subr.mxu0 0.0
  %82 = vmatpush1.msra.mxu0 0.0
  %83 = vmatprep.subr.mxu0 0.0
  %84 = vmatpush1.msra.mxu0 0.0
  %85 = vmatprep.subr.mxu0 0.0
  %86 = vmatpush1.msra.mxu0 0.0
  %87 = vmatprep.subr.mxu0 0.0
  %88 = vmatpush1.msra.mxu0 0.0
  %89 = vmatprep.subr.mxu0 0.0
  %90 = vmatpush1.msra.mxu0 0.0
  %91 = vmatprep.subr.mxu0 0.0
  %92 = vmatpush1.msra.mxu0 0.0
  %93 = vmatprep.subr.mxu0 0.0
  %94 = vmatpush1.msra.mxu0 0.0
  %95 = vmatprep.subr.mxu0 0.0
  %96 = vmatpush1.msra.mxu0 0.0
  %97 = vmatprep.mubr.f32.mxu0 0.0
  %98 = vmatmul.mubr.f32.gmra.mrb[0].mxu0 %v31
  %v99 = vpop.f32.mrb[0].mxu0
  %v100 = vadd.f32 %v27, %v99
  %v101 = vpop.f32.mrb[0].mxu0
  %v102 = vadd.f32 %v27, %v101
  %103 = vdwg.mxu0
  %s104 = scalar_lea.vmem %s1, 8
  %v105 = vld [vmem:[%s104] sm:$0xff]
  %s106 = scalar_lea.vmem %s2, 8
  %v107 = vld [vmem:[%s106] sm:$0xff]
  %109 = vset.pattern.permute.xlu0 0
  %110 = vperm.xlu0 %109, %v107
  %v111 = vpop.permute.xlu0 %110
  %v114 = vsel %vm29, %v105, 0
  %116 = vmatprep.subr.mxu0 %v102
  %117 = vmatpush1.msra.mxu0 %v100
  %118 = vmatprep.subr.mxu0 0.0
  %119 = vmatpush1.msra.mxu0 0.0
  %120 = vmatprep.subr.mxu0 0.0
  %121 = vmatpush1.msra.mxu0 0.0
  %122 = vmatprep.subr.mxu0 0.0
  %123 = vmatpush1.msra.mxu0 0.0
  %124 = vmatprep.subr.mxu0 0.0
  %125 = vmatpush1.msra.mxu0 0.0
  %126 = vmatprep.subr.mxu0 0.0
  %127 = vmatpush1.msra.mxu0 0.0
  %128 = vmatprep.subr.mxu0 0.0
  %129 = vmatpush1.msra.mxu0 0.0
  %130 = vmatprep.subr.mxu0 0.0
  %131 = vmatpush1.msra.mxu0 0.0
  %132 = vmatprep.subr.mxu0 0.0
  %133 = vmatpush1.msra.mxu0 0.0
  %134 = vmatprep.subr.mxu0 0.0
  %135 = vmatpush1.msra.mxu0 0.0
  %136 = vmatprep.subr.mxu0 0.0
  %137 = vmatpush1.msra.mxu0 0.0
  %138 = vmatprep.subr.mxu0 0.0
  %139 = vmatpush1.msra.mxu0 0.0
  %140 = vmatprep.subr.mxu0 0.0
  %141 = vmatpush1.msra.mxu0 0.0
  %142 = vmatprep.subr.mxu0 0.0
  %143 = vmatpush1.msra.mxu0 0.0
  %144 = vmatprep.subr.mxu0 0.0
  %145 = vmatpush1.msra.mxu0 0.0
  %146 = vmatprep.subr.mxu0 0.0
  %147 = vmatpush1.msra.mxu0 0.0
  %148 = vmatprep.subr.mxu0 0.0
  %149 = vmatpush1.msra.mxu0 0.0
  %150 = vmatprep.subr.mxu0 0.0
  %151 = vmatpush1.msra.mxu0 0.0
  %152 = vmatprep.subr.mxu0 0.0
  %153 = vmatpush1.msra.mxu0 0.0
  %154 = vmatprep.subr.mxu0 0.0
  %155 = vmatpush1.msra.mxu0 0.0
  %156 = vmatprep.subr.mxu0 0.0
  %157 = vmatpush1.msra.mxu0 0.0
  %158 = vmatprep.subr.mxu0 0.0
  %159 = vmatpush1.msra.mxu0 0.0
  %160 = vmatprep.subr.mxu0 0.0
  %161 = vmatpush1.msra.mxu0 0.0
  %162 = vmatprep.subr.mxu0 0.0
  %163 = vmatpush1.msra.mxu0 0.0
  %164 = vmatprep.subr.mxu0 0.0
  %165 = vmatpush1.msra.mxu0 0.0
  %166 = vmatprep.subr.mxu0 0.0
  %167 = vmatpush1.msra.mxu0 0.0
  %168 = vmatprep.subr.mxu0 0.0
  %169 = vmatpush1.msra.mxu0 0.0
  %170 = vmatprep.subr.mxu0 0.0
  %171 = vmatpush1.msra.mxu0 0.0
  %172 = vmatprep.subr.mxu0 0.0
  %173 = vmatpush1.msra.mxu0 0.0
  %174 = vmatprep.subr.mxu0 0.0
  %175 = vmatpush1.msra.mxu0 0.0
  %176 = vmatprep.subr.mxu0 0.0
  %177 = vmatpush1.msra.mxu0 0.0
  %178 = vmatprep.subr.mxu0 0.0
  %179 = vmatpush1.msra.mxu0 0.0
  %180 = vmatprep.mubr.f32.mxu0 0.0
  %181 = vmatmul.mubr.f32.gmra.mrb[0].mxu0 %v114
  %v182 = vpop.f32.mrb[0].mxu0
  %v183 = vadd.f32 %v111, %v182
  %v184 = vpop.f32.mrb[0].mxu0
  %v185 = vadd.f32 %v111, %v184
  %186 = vdwg.mxu0
  %s187 = scalar_lea.vmem %s1, 16
  %v188 = vld [vmem:[%s187] sm:$0xff]
  %s189 = scalar_lea.vmem %s2, 16
  %v190 = vld [vmem:[%s189] sm:$0xff]
  %192 = vset.pattern.permute.xlu0 0
  %193 = vperm.xlu0 %192, %v190
  %v194 = vpop.permute.xlu0 %193
  %v197 = vsel %vm29, %v188, 0
  %199 = vmatprep.subr.mxu0 %v185
  %200 = vmatpush1.msra.mxu0 %v183
  %201 = vmatprep.subr.mxu0 0.0
  %202 = vmatpush1.msra.mxu0 0.0
  %203 = vmatprep.subr.mxu0 0.0
  %204 = vmatpush1.msra.mxu0 0.0
  %205 = vmatprep.subr.mxu0 0.0
  %206 = vmatpush1.msra.mxu0 0.0
  %207 = vmatprep.subr.mxu0 0.0
  %208 = vmatpush1.msra.mxu0 0.0
  %209 = vmatprep.subr.mxu0 0.0
  %210 = vmatpush1.msra.mxu0 0.0
  %211 = vmatprep.subr.mxu0 0.0
  %212 = vmatpush1.msra.mxu0 0.0
  %213 = vmatprep.subr.mxu0 0.0
  %214 = vmatpush1.msra.mxu0 0.0
  %215 = vmatprep.subr.mxu0 0.0
  %216 = vmatpush1.msra.mxu0 0.0
  %217 = vmatprep.subr.mxu0 0.0
  %218 = vmatpush1.msra.mxu0 0.0
  %219 = vmatprep.subr.mxu0 0.0
  %220 = vmatpush1.msra.mxu0 0.0
  %221 = vmatprep.subr.mxu0 0.0
  %222 = vmatpush1.msra.mxu0 0.0
  %223 = vmatprep.subr.mxu0 0.0
  %224 = vmatpush1.msra.mxu0 0.0
  %225 = vmatprep.subr.mxu0 0.0
  %226 = vmatpush1.msra.mxu0 0.0
  %227 = vmatprep.subr.mxu0 0.0
  %228 = vmatpush1.msra.mxu0 0.0
  %229 = vmatprep.subr.mxu0 0.0
  %230 = vmatpush1.msra.mxu0 0.0
  %231 = vmatprep.subr.mxu0 0.0
  %232 = vmatpush1.msra.mxu0 0.0
  %233 = vmatprep.subr.mxu0 0.0
  %234 = vmatpush1.msra.mxu0 0.0
  %235 = vmatprep.subr.mxu0 0.0
  %236 = vmatpush1.msra.mxu0 0.0
  %237 = vmatprep.subr.mxu0 0.0
  %238 = vmatpush1.msra.mxu0 0.0
  %239 = vmatprep.subr.mxu0 0.0
  %240 = vmatpush1.msra.mxu0 0.0
  %241 = vmatprep.subr.mxu0 0.0
  %242 = vmatpush1.msra.mxu0 0.0
  %243 = vmatprep.subr.mxu0 0.0
  %244 = vmatpush1.msra.mxu0 0.0
  %245 = vmatprep.subr.mxu0 0.0
  %246 = vmatpush1.msra.mxu0 0.0
  %247 = vmatprep.subr.mxu0 0.0
  %248 = vmatpush1.msra.mxu0 0.0
  %249 = vmatprep.subr.mxu0 0.0
  %250 = vmatpush1.msra.mxu0 0.0
  %251 = vmatprep.subr.mxu0 0.0
  %252 = vmatpush1.msra.mxu0 0.0
  %253 = vmatprep.subr.mxu0 0.0
  %254 = vmatpush1.msra.mxu0 0.0
  %255 = vmatprep.subr.mxu0 0.0
  %256 = vmatpush1.msra.mxu0 0.0
  %257 = vmatprep.subr.mxu0 0.0
  %258 = vmatpush1.msra.mxu0 0.0
  %259 = vmatprep.subr.mxu0 0.0
  %260 = vmatpush1.msra.mxu0 0.0
  %261 = vmatprep.subr.mxu0 0.0
  %262 = vmatpush1.msra.mxu0 0.0
  %263 = vmatprep.mubr.f32.mxu0 0.0
  %264 = vmatmul.mubr.f32.gmra.mrb[0].mxu0 %v197
  %v265 = vpop.f32.mrb[0].mxu0
  %v266 = vadd.f32 %v194, %v265
  %v267 = vpop.f32.mrb[0].mxu0
  %v268 = vadd.f32 %v194, %v267
  %269 = vdwg.mxu0
  %s270 = scalar_lea.vmem %s1, 24
  %v271 = vld [vmem:[%s270] sm:$0xff]
  %s272 = scalar_lea.vmem %s2, 24
  %v273 = vld [vmem:[%s272] sm:$0xff]
  %275 = vset.pattern.permute.xlu0 0
  %276 = vperm.xlu0 %275, %v273
  %v277 = vpop.permute.xlu0 %276
  %v280 = vsel %vm29, %v271, 0
  %282 = vmatprep.subr.mxu0 %v268
  %283 = vmatpush1.msra.mxu0 %v266
  %284 = vmatprep.subr.mxu0 0.0
  %285 = vmatpush1.msra.mxu0 0.0
  %286 = vmatprep.subr.mxu0 0.0
  %287 = vmatpush1.msra.mxu0 0.0
  %288 = vmatprep.subr.mxu0 0.0
  %289 = vmatpush1.msra.mxu0 0.0
  %290 = vmatprep.subr.mxu0 0.0
  %291 = vmatpush1.msra.mxu0 0.0
  %292 = vmatprep.subr.mxu0 0.0
  %293 = vmatpush1.msra.mxu0 0.0
  %294 = vmatprep.subr.mxu0 0.0
  %295 = vmatpush1.msra.mxu0 0.0
  %296 = vmatprep.subr.mxu0 0.0
  %297 = vmatpush1.msra.mxu0 0.0
  %298 = vmatprep.subr.mxu0 0.0
  %299 = vmatpush1.msra.mxu0 0.0
  %300 = vmatprep.subr.mxu0 0.0
  %301 = vmatpush1.msra.mxu0 0.0
  %302 = vmatprep.subr.mxu0 0.0
  %303 = vmatpush1.msra.mxu0 0.0
  %304 = vmatprep.subr.mxu0 0.0
  %305 = vmatpush1.msra.mxu0 0.0
  %306 = vmatprep.subr.mxu0 0.0
  %307 = vmatpush1.msra.mxu0 0.0
  %308 = vmatprep.subr.mxu0 0.0
  %309 = vmatpush1.msra.mxu0 0.0
  %310 = vmatprep.subr.mxu0 0.0
  %311 = vmatpush1.msra.mxu0 0.0
  %312 = vmatprep.subr.mxu0 0.0
  %313 = vmatpush1.msra.mxu0 0.0
  %314 = vmatprep.subr.mxu0 0.0
  %315 = vmatpush1.msra.mxu0 0.0
  %316 = vmatprep.subr.mxu0 0.0
  %317 = vmatpush1.msra.mxu0 0.0
  %318 = vmatprep.subr.mxu0 0.0
  %319 = vmatpush1.msra.mxu0 0.0
  %320 = vmatprep.subr.mxu0 0.0
  %321 = vmatpush1.msra.mxu0 0.0
  %322 = vmatprep.subr.mxu0 0.0
  %323 = vmatpush1.msra.mxu0 0.0
  %324 = vmatprep.subr.mxu0 0.0
  %325 = vmatpush1.msra.mxu0 0.0
  %326 = vmatprep.subr.mxu0 0.0
  %327 = vmatpush1.msra.mxu0 0.0
  %328 = vmatprep.subr.mxu0 0.0
  %329 = vmatpush1.msra.mxu0 0.0
  %330 = vmatprep.subr.mxu0 0.0
  %331 = vmatpush1.msra.mxu0 0.0
  %332 = vmatprep.subr.mxu0 0.0
  %333 = vmatpush1.msra.mxu0 0.0
  %334 = vmatprep.subr.mxu0 0.0
  %335 = vmatpush1.msra.mxu0 0.0
  %336 = vmatprep.subr.mxu0 0.0
  %337 = vmatpush1.msra.mxu0 0.0
  %338 = vmatprep.subr.mxu0 0.0
  %339 = vmatpush1.msra.mxu0 0.0
  %340 = vmatprep.subr.mxu0 0.0
  %341 = vmatpush1.msra.mxu0 0.0
  %342 = vmatprep.subr.mxu0 0.0
  %343 = vmatpush1.msra.mxu0 0.0
  %344 = vmatprep.subr.mxu0 0.0
  %345 = vmatpush1.msra.mxu0 0.0
  %346 = vmatprep.mubr.f32.mxu0 0.0
  %347 = vmatmul.mubr.f32.gmra.mrb[0].mxu0 %v280
  %v348 = vpop.f32.mrb[0].mxu0
  %v349 = vadd.f32 %v277, %v348
  %v350 = vpop.f32.mrb[0].mxu0
  %v351 = vadd.f32 %v277, %v350
  %352 = vdwg.mxu0
  %v353 = vld [vmem:[%s3] sm:$0xff]
  %v354 = vld [vmem:[%s4] sm:$0xff]
  %356 = vset.pattern.permute.xlu0 0
  %357 = vperm.xlu0 %356, %v354
  %v358 = vpop.permute.xlu0 %357
  %v361 = vsel %vm29, %v353, 0
  %363 = vmatprep.subr.mxu0 %v351
  %364 = vmatpush1.msra.mxu0 %v349
  %365 = vmatprep.subr.mxu0 0.0
  %366 = vmatpush1.msra.mxu0 0.0
  %367 = vmatprep.subr.mxu0 0.0
  %368 = vmatpush1.msra.mxu0 0.0
  %369 = vmatprep.subr.mxu0 0.0
  %370 = vmatpush1.msra.mxu0 0.0
  %371 = vmatprep.subr.mxu0 0.0
  %372 = vmatpush1.msra.mxu0 0.0
  %373 = vmatprep.subr.mxu0 0.0
  %374 = vmatpush1.msra.mxu0 0.0
  %375 = vmatprep.subr.mxu0 0.0
  %376 = vmatpush1.msra.mxu0 0.0
  %377 = vmatprep.subr.mxu0 0.0
  %378 = vmatpush1.msra.mxu0 0.0
  %379 = vmatprep.subr.mxu0 0.0
  %380 = vmatpush1.msra.mxu0 0.0
  %381 = vmatprep.subr.mxu0 0.0
  %382 = vmatpush1.msra.mxu0 0.0
  %383 = vmatprep.subr.mxu0 0.0
  %384 = vmatpush1.msra.mxu0 0.0
  %385 = vmatprep.subr.mxu0 0.0
  %386 = vmatpush1.msra.mxu0 0.0
  %387 = vmatprep.subr.mxu0 0.0
  %388 = vmatpush1.msra.mxu0 0.0
  %389 = vmatprep.subr.mxu0 0.0
  %390 = vmatpush1.msra.mxu0 0.0
  %391 = vmatprep.subr.mxu0 0.0
  %392 = vmatpush1.msra.mxu0 0.0
  %393 = vmatprep.subr.mxu0 0.0
  %394 = vmatpush1.msra.mxu0 0.0
  %395 = vmatprep.subr.mxu0 0.0
  %396 = vmatpush1.msra.mxu0 0.0
  %397 = vmatprep.subr.mxu0 0.0
  %398 = vmatpush1.msra.mxu0 0.0
  %399 = vmatprep.subr.mxu0 0.0
  %400 = vmatpush1.msra.mxu0 0.0
  %401 = vmatprep.subr.mxu0 0.0
  %402 = vmatpush1.msra.mxu0 0.0
  %403 = vmatprep.subr.mxu0 0.0
  %404 = vmatpush1.msra.mxu0 0.0
  %405 = vmatprep.subr.mxu0 0.0
  %406 = vmatpush1.msra.mxu0 0.0
  %407 = vmatprep.subr.mxu0 0.0
  %408 = vmatpush1.msra.mxu0 0.0
  %409 = vmatprep.subr.mxu0 0.0
  %410 = vmatpush1.msra.mxu0 0.0
  %411 = vmatprep.subr.mxu0 0.0
  %412 = vmatpush1.msra.mxu0 0.0
  %413 = vmatprep.subr.mxu0 0.0
  %414 = vmatpush1.msra.mxu0 0.0
  %415 = vmatprep.subr.mxu0 0.0
  %416 = vmatpush1.msra.mxu0 0.0
  %417 = vmatprep.subr.mxu0 0.0
  %418 = vmatpush1.msra.mxu0 0.0
  %419 = vmatprep.subr.mxu0 0.0
  %420 = vmatpush1.msra.mxu0 0.0
  %421 = vmatprep.subr.mxu0 0.0
  %422 = vmatpush1.msra.mxu0 0.0
  %423 = vmatprep.subr.mxu0 0.0
  %424 = vmatpush1.msra.mxu0 0.0
  %425 = vmatprep.subr.mxu0 0.0
  %426 = vmatpush1.msra.mxu0 0.0
  %427 = vmatprep.mubr.f32.mxu0 0.0
  %428 = vmatmul.mubr.f32.gmra.mrb[0].mxu0 %v361
  %v429 = vpop.f32.mrb[0].mxu0
  %v430 = vadd.f32 %v358, %v429
  %v431 = vpop.f32.mrb[0].mxu0
  %v432 = vadd.f32 %v358, %v431
  %433 = vdwg.mxu0
  %v434 = vmax.f32 %v430, 0.0
  %v435 = vmax.f32 %v432, 0.0
  %v436 = vmin.f32 %v434, 1.0
  %v437 = vmin.f32 %v435, 1.0
  %438 = vst [vmem:[%s5] sm:$0xff] %v436
  %439 = vst [vmem:[%s5 + $0x8] sm:$0xff] %v437
  // Predicated region
  $region22: #{_impl.1} parent=0 // pred_check
    _
  $region23: #{_impl.1} parent=0 // pred_check_branch
    %441 = sbr.rel (0) target = $region25
  $region24: #{_impl.1} parent=0 // pred_region
    _
  $region25: #{_impl.1} parent=0 // pred_fallthru
    _
  // Predicated region
  $region26: #{_impl.1} parent=0 // pred_check
    _
  $region27: #{_impl.1} parent=0 // pred_check_branch
    %443 = sbr.rel (0) target = $region29
  $region28: #{_impl.1} parent=0 // pred_region
    _
  $region29: #{_impl.1} parent=0 // pred_fallthru
    _

</llo_original>
